<compile_context>
chip_gen: v7x
topology: tpu7x:2x2x1
jax: 0.10.0
libtpu: 0.0.40
codegen_flags: <defaults>
</compile_context>

<pallas_src>
import jax
import jax.numpy as jnp
from jax import lax
from jax.experimental import pallas as pl
from jax.experimental.pallas import tpu as pltpu


def _mlp_kernel(x_ref, w_ref, b_ref, o_ref):
    # x_ref: (C, THW)  -- channels on sublanes, contiguous HW positions on lanes
    # w_ref: (C, E)    -- pre-transposed nn.Linear weight
    # b_ref: (1, E)    -- f32 bias
    # o_ref: (THW, E)
    acc = lax.dot_general(
        x_ref[...],
        w_ref[...],
        dimension_numbers=(((0,), (0,)), ((), ())),  # contract C with C (LHS^T)
        preferred_element_type=jnp.float32,
    )
    o_ref[...] = (acc + b_ref[...]).astype(o_ref.dtype)


def _pick_hw_tile(hw: int, batch: int, c: int, e: int,
                  in_itemsize: int, out_itemsize: int,
                  budget_bytes: int = 40 << 20) -> int:
    """Pick the HW row tile.

    Prefer the largest tile that fits the VMEM budget (tiled-copy utilization
    keeps climbing up to ~512-1024 wide tiles), but keep >= 2 total grid steps
    when possible so both v7x TensorCores get work.
    """
    if hw <= 128:
        # Block last dim must be a multiple of 128 or equal the full dim.
        return hw
    fixed = c * e * in_itemsize + e * 4  # single-buffered weight + bias
    for cand in (1024, 512, 256, 128):
        if hw < cand:
            continue
        per_tile = 2 * c * cand * in_itemsize + 2 * cand * e * out_itemsize
        if fixed + per_tile > budget_bytes:
            continue
        if batch * pl.cdiv(hw, cand) >= 2 or cand == 128:
            return cand
    return 128


def _vmem_limit_bytes(c: int, t_hw: int, e: int,
                      in_itemsize: int, out_itemsize: int) -> int:
    need = (
        2 * c * t_hw * in_itemsize      # double-buffered X tile
        + 2 * t_hw * e * out_itemsize   # double-buffered Y tile
        + 2 * c * e * in_itemsize       # weight (margin even if single-buffered)
        + 2 * e * 4                     # bias
    )
    # 2x margin for compiler scratch; at least the v6e/v7x default (32 MiB),
    # capped at 48 MiB to stay safely inside v7x's 64 MiB physical VMEM.
    return int(min(max(2 * need, 32 << 20), 48 << 20))


def mlp_forward(x_nchw, weight, bias, *, compute_dtype=None, out_dtype=None,
                hw_tile=None):
    """SegFormer MLP.forward: (B, C, H, W) -> (B, H*W, E).

    weight: (E, C) torch nn.Linear layout; bias: (E,).
    compute_dtype: optionally bf16 for x / weight (halves HBM read bytes);
      accumulation and bias add stay f32.
    """
    B, C, H, W = x_nchw.shape
    E, C_w = weight.shape
    assert C_w == C, (C_w, C)
    HW = H * W
    out_dtype = out_dtype if out_dtype is not None else x_nchw.dtype

    # Free (contiguous) reshape: NCHW -> (B, C, HW).  The HW-vs-C transpose is
    # fused into the kernel via BlockSpec + dot_general, not done in HBM here.
    x3 = x_nchw.reshape(B, C, HW)
    w_t = weight.T  # (C, E); tiny one-off op (pre-transpose once in real use)
    if compute_dtype is not None:
        x3 = x3.astype(compute_dtype)
        w_t = w_t.astype(compute_dtype)
    b2 = bias.astype(jnp.float32).reshape(1, E)

    in_isz = jnp.dtype(x3.dtype).itemsize
    out_isz = jnp.dtype(out_dtype).itemsize
    t_hw = hw_tile if hw_tile is not None else _pick_hw_tile(
        HW, B, C, E, in_isz, out_isz)
    grid = (B, pl.cdiv(HW, t_hw))

    vmem_limit = _vmem_limit_bytes(C, t_hw, E, in_isz, out_isz)

    return pl.pallas_call(
        _mlp_kernel,
        out_shape=jax.ShapeDtypeStruct((B, HW, E), out_dtype),
        grid_spec=pltpu.PrefetchScalarGridSpec(
            num_scalar_prefetch=0,
            grid=grid,
            in_specs=[
                # (C, t_hw) tile of the (B, C, HW) view: lane axis = HW.
                pl.BlockSpec((pl.Squeezed(), C, t_hw), lambda b, i: (b, 0, i)),
                # Full weight / bias, constant index map -> fetched once,
                # single-buffered to halve their VMEM footprint.
                pl.BlockSpec((C, E), lambda b, i: (0, 0),
                             pipeline_mode=pl.Buffered(1)),
                pl.BlockSpec((1, E), lambda b, i: (0, 0),
                             pipeline_mode=pl.Buffered(1)),
            ],
            out_specs=pl.BlockSpec((pl.Squeezed(), t_hw, E),
                                   lambda b, i: (b, i, 0)),
        ),
        compiler_params=pltpu.CompilerParams(
            dimension_semantics=("parallel", "parallel"),
            vmem_limit_bytes=vmem_limit,
        ),
    )(x3, w_t, b2)


if __name__ == "__main__":
    # Small, TPU-friendly shapes consistent with the module (input_dim = C).
    B, C, H, W = 2, 128, 16, 16
    E = 256  # embed_dim

    key = jax.random.PRNGKey(0)
    kx, kw, kb = jax.random.split(key, 3)

    x = jax.random.normal(kx, (B, C, H, W), dtype=jnp.float32)
    # Deterministic synthetic parameters (same shapes as nn.Linear(C, E)).
    weight = jax.random.normal(kw, (E, C), dtype=jnp.float32) * 0.02
    bias = jax.random.normal(kb, (E,), dtype=jnp.float32) * 0.02

    # f32 path.
    out = jax.block_until_ready(mlp_forward(x, weight, bias))

    # Reference in plain JAX (full-precision matmul).
    x_seq = jnp.transpose(x.reshape(B, C, H * W), (0, 2, 1))  # (B, HW, C)
    ref = jnp.matmul(x_seq, weight.T, precision=lax.Precision.HIGHEST) + bias
    assert out.shape == (B, H * W, E), out.shape
    assert jnp.allclose(out, ref, atol=2e-3, rtol=2e-3), "f32 mismatch vs reference"

    # Optional bf16-input path (bandwidth optimization): f32 accumulate + bias.
    out_bf16 = jax.block_until_ready(
        mlp_forward(x, weight, bias, compute_dtype=jnp.bfloat16))
    assert out_bf16.dtype == jnp.float32
    assert jnp.allclose(out_bf16, ref, atol=3e-2, rtol=3e-2), "bf16 mismatch vs reference"

    print("KERNEL_OK")
</pallas_src>

<mosaic_0001>
module attributes {stable_mosaic.version = 11 : i64} {
  func.func @_mlp_kernel(%arg0: i32, %arg1: i32, %arg2: memref<1x128x256xf32, #tpu.memory_space<vmem>>, %arg3: memref<128x256xf32, #tpu.memory_space<vmem>>, %arg4: memref<1x256xf32, #tpu.memory_space<vmem>>, %arg5: memref<1x256x256xf32, #tpu.memory_space<vmem>>) attributes {dimension_semantics = [#tpu.dimension_semantics<parallel>, #tpu.dimension_semantics<parallel>], iteration_bounds = array<i64: 2, 1>, scalar_prefetch = 0 : i64, scratch_operands = 0 : i64, tpu.core_type = #tpu.core_type<tc>, window_params = [{transform_indices = @transform_0, window_bounds = array<i64: 1, 128, 256>}, {pipeline_mode = #tpu.pipeline_mode<synchronous>, transform_indices = @transform_1, window_bounds = array<i64: 128, 256>}, {pipeline_mode = #tpu.pipeline_mode<synchronous>, transform_indices = @transform_2, window_bounds = array<i64: 1, 256>}, {transform_indices = @transform_3, window_bounds = array<i64: 1, 256, 256>}]} {
    %c0 = arith.constant 0 : index
    %c0_0 = arith.constant 0 : index
    %c0_1 = arith.constant 0 : index
    %0 = vector.load %arg2[%c0, %c0_0, %c0_1] : memref<1x128x256xf32, #tpu.memory_space<vmem>>, vector<1x128x256xf32>
    %1 = vector.shape_cast %0 : vector<1x128x256xf32> to vector<128x256xf32>
    %c0_2 = arith.constant 0 : index
    %c0_3 = arith.constant 0 : index
    %2 = vector.load %arg3[%c0_2, %c0_3] : memref<128x256xf32, #tpu.memory_space<vmem>>, vector<128x256xf32>
    %cst = arith.constant dense<0.000000e+00> : vector<256x256xf32>
    %3 = tpu.matmul %1, %2, %cst {dimension_numbers = #tpu.dot_dimension_numbers<[0], [0], [1], [1], [0, 1, 1, 1], [], []>} : vector<128x256xf32>, vector<128x256xf32>, vector<256x256xf32> -> vector<256x256xf32>
    %c0_4 = arith.constant 0 : index
    %c0_5 = arith.constant 0 : index
    %4 = vector.load %arg4[%c0_4, %c0_5] : memref<1x256xf32, #tpu.memory_space<vmem>>, vector<1x256xf32>
    %5 = vector.broadcast %4 : vector<1x256xf32> to vector<256x256xf32>
    %6 = arith.addf %3, %5 : vector<256x256xf32>
    %c0_6 = arith.constant 0 : index
    %c0_7 = arith.constant 0 : index
    %c0_8 = arith.constant 0 : index
    %7 = vector.load %arg5[%c0_6, %c0_7, %c0_8] : memref<1x256x256xf32, #tpu.memory_space<vmem>>, vector<1x256x256xf32>
    %8 = vector.shape_cast %7 : vector<1x256x256xf32> to vector<256x256xf32>
    %9 = vector.shape_cast %6 : vector<256x256xf32> to vector<1x256x256xf32>
    tpu.vector_store %arg5[%c0_6, %c0_7, %c0_8], %9 {strides = array<i32>} : memref<1x256x256xf32, #tpu.memory_space<vmem>>, vector<1x256x256xf32>,
    return
  }
  func.func @transform_0(%arg0: i32, %arg1: i32) -> (i32, i32, i32) {
    %c0_i32 = arith.constant 0 : i32
    %c0_i32_0 = arith.constant 0 : i32
    return %arg0, %c0_i32, %arg1 : i32, i32, i32
  }
  func.func @transform_1(%arg0: i32, %arg1: i32) -> (i32, i32) {
    %c0_i32 = arith.constant 0 : i32
    %c0_i32_0 = arith.constant 0 : i32
    %c0_i32_1 = arith.constant 0 : i32
    return %c0_i32, %c0_i32_0 : i32, i32
  }
  func.func @transform_2(%arg0: i32, %arg1: i32) -> (i32, i32) {
    %c0_i32 = arith.constant 0 : i32
    %c0_i32_0 = arith.constant 0 : i32
    %c0_i32_1 = arith.constant 0 : i32
    return %c0_i32, %c0_i32_0 : i32, i32
  }
  func.func @transform_3(%arg0: i32, %arg1: i32) -> (i32, i32, i32) {
    %c0_i32 = arith.constant 0 : i32
    %c0_i32_0 = arith.constant 0 : i32
    return %arg0, %arg1, %c0_i32 : i32, i32, i32
  }
}

</mosaic_0001>

<llo_original>
// kernel: tpu_custom_call.1
$region0: #{tpu_custom_call.1}
  #allocation0 [shape = 'u32[]', space=smem, size = 0x4, offset = 0x4, fixed_abs, tag = 'smem constant byte address 0x4 - core index']
  #allocation1 [shape = 'u32[144,128]{1,0:T(1,128)}', space=vmem, size = 0x12000, scoped, tag = 'internal scratch']
  %s0 = inlined_call_operand.hbm [shape: f32[2,128,256], index: 0, kind: input, shape index: {}]
  %s1 = inlined_call_operand.hbm [shape: f32[128,256], index: 1, kind: input, shape index: {}]
  %s2 = inlined_call_operand.vmem [shape: f32[1,256], index: 2, kind: input, shape index: {}]
  %s3 = inlined_call_operand.hbm [shape: f32[2,256,256], index: 3, kind: output, shape index: {}]
  %s4 = sld [smem:[#allocation0]]
  $region53: #{tpu_custom_call.1} parent=0
    _
  %s6 = ssub.s32 1, %s4
  %s7 = scalar_select 0, %s6, %s4
  $region1: #{tpu_custom_call.1} parent=0
    #allocation2 [shape = 'u8[262144]{0}', space=vmem, size = 0x40000, scoped, tag = 'input window, operand 0']
    #allocation3 [shape = 's32[2]{0}', space=sflag, size = 0x8, scoped, tag = 'scoped memory for tpu_custom_call.1']
    #allocation4 [shape = 's32[2]{0}', space=sflag, size = 0x8, scoped, tag = 'scoped memory for tpu_custom_call.1']
    #allocation5 [shape = 'u8[131072]{0}', space=vmem, size = 0x20000, scoped, tag = 'input window, operand 1, single buffered']
    #allocation6 [shape = 's32[1]{0}', space=sflag, size = 0x4, scoped, tag = 'scoped memory for tpu_custom_call.1']
    #allocation7 [shape = 'u8[524288]{0}', space=vmem, size = 0x80000, scoped, tag = 'output window, operand 0']
    %8 = vsyncpa [#allocation3], 0
    %s9 = scalar_lea.sflag [#allocation3], 1
    %10 = vsyncpa %s9, 0
    %11 = vsyncpa [#allocation6], 0
    %12 = vsyncpa [#allocation4], 0
    %s13 = scalar_lea.sflag [#allocation4], 1
    %14 = vsyncpa %s13, 0
    loop: start=0, step=1, limit=4
    $region2: #{tpu_custom_call.1} parent=1 // loop_pre_header
      _
    $region3: #{tpu_custom_call.1} parent=1 // loop_header
      %s16 = sphi 0, %s20
      %p17 = scmp.ge.s32.totalorder %s16, 4
      %s23 = sphi 0, %s35
      %s24 = sphi 0, %s31
      %s25 = sphi 0, %s23
      %s26 = sphi 0, %s24
      %s27 = sphi 0, %s25
      %s28 = sphi 0, %s26
      %s40 = sphi 0, %s42
      %s43 = sphi 0, %s40
      %s44 = sphi 0, %s43
      %s60 = sphi 0, %s44
      %s64 = sphi 0, %s64
      %s66 = sphi 0, %s64
      %s67 = sphi 0, %s66
      %s81 = sphi 0, %s67
      %s85 = sphi 0, %s85
      %s87 = sphi 0, %s85
      %s88 = sphi 0, %s87
      %s102 = sphi 0, %s88
      %s110 = sphi 0, %s112
      %s113 = sphi 0, %s110
      %s114 = sphi 0, %s113
      %s130 = sphi 0, %s114
    $region4: #{tpu_custom_call.1} parent=1 // loop_header_branch
      %19 = sbr.rel (%p17) target = $region8
    $region5: #{tpu_custom_call.1} parent=1 // loop_body
      %s21 = ssub.s32 %s16, 1
      %s22 = ssub.s32 %s16, 2
      %s29 = sadd.s32 1, %s24
      %p30 = scmp.ge.s32.totalorder %s29, 1
      %s31 = scalar_select %p30, 0, %s29
      %s32 = sadd.s32 1, %s23
      %s33 = scalar_select %p30, %s32, %s23
      %p34 = scmp.ge.s32.totalorder %s33, 2
      %s35 = scalar_select %p34, 0, %s33
      %s36 = ssub.s32 %s23, %s35
      %s37 = ssub.s32 %s24, %s31
      %s38 = sor.u32 %s36, %s37
      %p39 = scmp.eq.s32.totalorder %s38, 0
      %s41 = sadd.s32 %s40, 1
      %s42 = scalar_select %p39, %s40, %s41
      %p45 = pneg %p39
      %p46 = scmp.eq.s32.totalorder %s16, 1
      %p47 = por %p45, %p46
      %p48 = scmp.ne.s32.totalorder %s40, %s43
      %p49 = scmp.eq.s32.totalorder %s16, 0
      %p50 = por %p48, %p49
      %p51 = scmp.ne.s32.totalorder %s40, %s43
      %p52 = scmp.eq.s32.totalorder %s21, 1
      %p53 = por %p51, %p52
      %p54 = scmp.ne.s32.totalorder %s43, %s44
      %p55 = scmp.eq.s32.totalorder %s21, 0
      %p56 = por %p54, %p55
      %p57 = scmp.ne.s32.totalorder %s43, %s44
      %p58 = scmp.eq.s32.totalorder %s22, 1
      %p59 = por %p57, %p58
      %p61 = scmp.ne.s32.totalorder %s44, %s60
      %p62 = scmp.eq.s32.totalorder %s22, 0
      %p63 = por %p61, %p62
      %s65 = sadd.s32 %s64, 1
      %p68 = scmp.eq.s32.totalorder %s16, 1
      %p69 = scmp.ne.s32.totalorder %s64, %s66
      %p70 = scmp.eq.s32.totalorder %s16, 0
      %p71 = por %p69, %p70
      %p72 = scmp.ne.s32.totalorder %s64, %s66
      %p73 = scmp.eq.s32.totalorder %s21, 1
      %p74 = por %p72, %p73
      %p75 = scmp.ne.s32.totalorder %s66, %s67
      %p76 = scmp.eq.s32.totalorder %s21, 0
      %p77 = por %p75, %p76
      %p78 = scmp.ne.s32.totalorder %s66, %s67
      %p79 = scmp.eq.s32.totalorder %s22, 1
      %p80 = por %p78, %p79
      %p82 = scmp.ne.s32.totalorder %s67, %s81
      %p83 = scmp.eq.s32.totalorder %s22, 0
      %p84 = por %p82, %p83
      %s86 = sadd.s32 %s85, 1
      %p89 = scmp.eq.s32.totalorder %s16, 1
      %p90 = scmp.ne.s32.totalorder %s85, %s87
      %p91 = scmp.eq.s32.totalorder %s16, 0
      %p92 = por %p90, %p91
      %p93 = scmp.ne.s32.totalorder %s85, %s87
      %p94 = scmp.eq.s32.totalorder %s21, 1
      %p95 = por %p93, %p94
      %p96 = scmp.ne.s32.totalorder %s87, %s88
      %p97 = scmp.eq.s32.totalorder %s21, 0
      %p98 = por %p96, %p97
      %p99 = scmp.ne.s32.totalorder %s87, %s88
      %p100 = scmp.eq.s32.totalorder %s22, 1
      %p101 = por %p99, %p100
      %p103 = scmp.ne.s32.totalorder %s88, %s102
      %p104 = scmp.eq.s32.totalorder %s22, 0
      %p105 = por %p103, %p104
      %s106 = ssub.s32 %s23, %s35
      %s107 = ssub.s32 %s24, %s31
      %s108 = sor.u32 %s106, %s107
      %p109 = scmp.eq.s32.totalorder %s108, 0
      %s111 = sadd.s32 %s110, 1
      %s112 = scalar_select %p109, %s110, %s111
      %p115 = pneg %p109
      %p116 = scmp.eq.s32.totalorder %s16, 1
      %p117 = por %p115, %p116
      %p118 = scmp.ne.s32.totalorder %s110, %s113
      %p119 = scmp.eq.s32.totalorder %s16, 0
      %p120 = por %p118, %p119
      %p121 = scmp.ne.s32.totalorder %s110, %s113
      %p122 = scmp.eq.s32.totalorder %s21, 1
      %p123 = por %p121, %p122
      %p124 = scmp.ne.s32.totalorder %s113, %s114
      %p125 = scmp.eq.s32.totalorder %s21, 0
      %p126 = por %p124, %p125
      %p127 = scmp.ne.s32.totalorder %s113, %s114
      %p128 = scmp.eq.s32.totalorder %s22, 1
      %p129 = por %p127, %p128
      %p131 = scmp.ne.s32.totalorder %s114, %s130
      %p132 = scmp.eq.s32.totalorder %s22, 0
      %p133 = por %p131, %p132
      %p134 = scmp.le.s32.totalorder 1, %s16
      %p135 = scmp.lt.s32.totalorder %s16, 3
      %p136 = pnand %p134, %p135
      %p137 = pneg %p136
      // Predicated region
      $region9: #{tpu_custom_call.1} parent=5 // pred_check
        _
      $region10: #{tpu_custom_call.1} parent=5 // pred_check_branch
        %139 = sbr.rel (%p136) target = $region12
      $region11: #{tpu_custom_call.1} parent=5 // pred_region
        %s140 = ssub.s32 %s16, 1
        // Predicated region
        $region13: #{tpu_custom_call.1} parent=11 // pred_check
          %p141 = pneg %p77
        $region14: #{tpu_custom_call.1} parent=11 // pred_check_branch
          %143 = sbr.rel (%p141) target = $region16
        $region15: #{tpu_custom_call.1} parent=11 // pred_region
          %s145 = ssub.s32 4096, 4096
          %146 = vsyncadd [#allocation6], %s145
          %s147 = sshll.u32 [#allocation5], 4
          %s148 = int_to_ptr.vmem [resolvable:$true] %s147
          %153 = dma.hbm_to_vmem [thread:$0]  %s1, 4096, %s148, [#allocation6], 256, 256, 16
        $region16: #{tpu_custom_call.1} parent=11 // pred_fallthru
          _
        // Predicated region
        $region17: #{tpu_custom_call.1} parent=11 // pred_check
          %p154 = pneg %p98
        $region18: #{tpu_custom_call.1} parent=11 // pred_check_branch
          %156 = sbr.rel (%p154) target = $region20
        $region19: #{tpu_custom_call.1} parent=11 // pred_region
          _
        $region20: #{tpu_custom_call.1} parent=11 // pred_fallthru
          _
      $region12: #{tpu_custom_call.1} parent=5 // pred_fallthru
        _
      %p157 = scmp.lt.s32.totalorder %s16, 2
      // Predicated region
      $region21: #{tpu_custom_call.1} parent=5 // pred_check
        %p158 = pneg %p157
      $region22: #{tpu_custom_call.1} parent=5 // pred_check_branch
        %160 = sbr.rel (%p158) target = $region24
      $region23: #{tpu_custom_call.1} parent=5 // pred_region
        // Predicated region
        $region25: #{tpu_custom_call.1} parent=23 // pred_check
          %p161 = pneg %p50
        $region26: #{tpu_custom_call.1} parent=23 // pred_check_branch
          %163 = sbr.rel (%p161) target = $region28
        $region27: #{tpu_custom_call.1} parent=23 // pred_region
          %s164 = sand.u32 %s40, 1
          %s165 = scalar_lea.sflag [#allocation3], %s164
          %s166 = sand.u32 %s40, 1
          %s167 = smul.addr %s166, 256
          %s168 = scalar_lea.vmem [#allocation2], %s167
          %s169 = smul.u32 2, %s24
          %s171 = ssub.s32 4096, 4096
          %172 = vsyncadd %s165, %s171
          %s173 = smul.addr %s23, 32
          %s174 = sadd.s32 %s169, %s173
          %s175 = smul.addr %s174, 128
          %s176 = scalar_lea.hbm %s0, %s175
          %s177 = sshll.u32 %s168, 4
          %s178 = int_to_ptr.vmem [resolvable:$true] %s177
          %183 = dma.hbm_to_vmem [thread:$0]  %s176, 4096, %s178, %s165, 256, 256, 16
        $region28: #{tpu_custom_call.1} parent=23 // pred_fallthru
          _
      $region24: #{tpu_custom_call.1} parent=5 // pred_fallthru
        _
      %p184 = scmp.le.s32.totalorder 1, %s16
      %p185 = scmp.lt.s32.totalorder %s16, 3
      %p186 = pnand %p184, %p185
      %p187 = pneg %p186
      // Predicated region
      $region29: #{tpu_custom_call.1} parent=5 // pred_check
        _
      $region30: #{tpu_custom_call.1} parent=5 // pred_check_branch
        %189 = sbr.rel (%p186) target = $region32
      $region31: #{tpu_custom_call.1} parent=5 // pred_region
        %s190 = ssub.s32 %s16, 1
        %s191 = sand.u32 %s43, 1
        %s192 = scalar_lea.sflag [#allocation3], %s191
        %s193 = sand.u32 %s43, 1
        %s194 = smul.addr %s193, 256
        %s195 = scalar_lea.vmem [#allocation2], %s194
        // Predicated region
        $region33: #{tpu_custom_call.1} parent=31 // pred_check
          %p196 = pneg %p56
        $region34: #{tpu_custom_call.1} parent=31 // pred_check_branch
          %198 = sbr.rel (%p196) target = $region36
        $region35: #{tpu_custom_call.1} parent=31 // pred_region
          %199 = dma.done %s192, 4096
        $region36: #{tpu_custom_call.1} parent=31 // pred_fallthru
          _
        // Predicated region
        $region37: #{tpu_custom_call.1} parent=31 // pred_check
          %p200 = pneg %p77
        $region38: #{tpu_custom_call.1} parent=31 // pred_check_branch
          %202 = sbr.rel (%p200) target = $region40
        $region39: #{tpu_custom_call.1} parent=31 // pred_region
          %203 = dma.done [#allocation6], 4096
        $region40: #{tpu_custom_call.1} parent=31 // pred_fallthru
          _
        %s204 = sand.u32 %s43, 1
        %s205 = scalar_lea.sflag [#allocation3], %s204
        %s206 = sand.u32 %s43, 1
        %s207 = smul.addr %s206, 256
        %s208 = scalar_lea.vmem [#allocation2], %s207
        %p209 = pneg %p56
        %p210 = pneg %p53
        %p211 = pneg %p77
        %p212 = pneg %p74
        %p213 = pneg %p98
        %p214 = pneg %p95
        %p215 = pneg %p126
        %p216 = pneg %p123
        %s217 = sand.u32 %s113, 1
        %s218 = scalar_lea.sflag [#allocation4], %s217
        %s219 = sand.u32 %s113, 1
        %s220 = smul.addr %s219, 512
        %s221 = scalar_lea.vmem [#allocation7], %s220
        %s222 = smul.u32 2, %s26
        %s223 = smul.u32 32, %s26
        %v224 = vld [vmem:[%s195] sm:$0xff]
        %v225 = vld [vmem:[%s195 + $0x8] sm:$0xff]
        %v226 = vld [vmem:[%s195 + $0x10] sm:$0xff]
        %v227 = vld [vmem:[%s195 + $0x18] sm:$0xff]
        %v228 = vld [vmem:[%s195 + $0x20] sm:$0xff]
        %v229 = vld [vmem:[%s195 + $0x28] sm:$0xff]
        %v230 = vld [vmem:[%s195 + $0x30] sm:$0xff]
        %v231 = vld [vmem:[%s195 + $0x38] sm:$0xff]
        %v232 = vld [vmem:[%s195 + $0x40] sm:$0xff]
        %v233 = vld [vmem:[%s195 + $0x48] sm:$0xff]
        %v234 = vld [vmem:[%s195 + $0x50] sm:$0xff]
        %v235 = vld [vmem:[%s195 + $0x58] sm:$0xff]
        %v236 = vld [vmem:[%s195 + $0x60] sm:$0xff]
        %v237 = vld [vmem:[%s195 + $0x68] sm:$0xff]
        %v238 = vld [vmem:[%s195 + $0x70] sm:$0xff]
        %v239 = vld [vmem:[%s195 + $0x78] sm:$0xff]
        %v240 = vld [vmem:[%s195 + $0x80] sm:$0xff]
        %v241 = vld [vmem:[%s195 + $0x88] sm:$0xff]
        %v242 = vld [vmem:[%s195 + $0x90] sm:$0xff]
        %v243 = vld [vmem:[%s195 + $0x98] sm:$0xff]
        %v244 = vld [vmem:[%s195 + $0xa0] sm:$0xff]
        %v245 = vld [vmem:[%s195 + $0xa8] sm:$0xff]
        %v246 = vld [vmem:[%s195 + $0xb0] sm:$0xff]
        %v247 = vld [vmem:[%s195 + $0xb8] sm:$0xff]
        %v248 = vld [vmem:[%s195 + $0xc0] sm:$0xff]
        %v249 = vld [vmem:[%s195 + $0xc8] sm:$0xff]
        %v250 = vld [vmem:[%s195 + $0xd0] sm:$0xff]
        %v251 = vld [vmem:[%s195 + $0xd8] sm:$0xff]
        %v252 = vld [vmem:[%s195 + $0xe0] sm:$0xff]
        %v253 = vld [vmem:[%s195 + $0xe8] sm:$0xff]
        %v254 = vld [vmem:[%s195 + $0xf0] sm:$0xff]
        %v255 = vld [vmem:[%s195 + $0xf8] sm:$0xff]
        %v256 = vld [vmem:[#allocation5] sm:$0xff]
        %v257 = vld [vmem:[#allocation5 + $0x8] sm:$0xff]
        %v258 = vld [vmem:[#allocation5 + $0x10] sm:$0xff]
        %v259 = vld [vmem:[#allocation5 + $0x18] sm:$0xff]
        %v260 = vld [vmem:[#allocation5 + $0x20] sm:$0xff]
        %v261 = vld [vmem:[#allocation5 + $0x28] sm:$0xff]
        %v262 = vld [vmem:[#allocation5 + $0x30] sm:$0xff]
        %v263 = vld [vmem:[#allocation5 + $0x38] sm:$0xff]
        %v264 = vld [vmem:[#allocation5 + $0x40] sm:$0xff]
        %v265 = vld [vmem:[#allocation5 + $0x48] sm:$0xff]
        %v266 = vld [vmem:[#allocation5 + $0x50] sm:$0xff]
        %v267 = vld [vmem:[#allocation5 + $0x58] sm:$0xff]
        %v268 = vld [vmem:[#allocation5 + $0x60] sm:$0xff]
        %v269 = vld [vmem:[#allocation5 + $0x68] sm:$0xff]
        %v270 = vld [vmem:[#allocation5 + $0x70] sm:$0xff]
        %v271 = vld [vmem:[#allocation5 + $0x78] sm:$0xff]
        %v272 = vld [vmem:[#allocation5 + $0x80] sm:$0xff]
        %v273 = vld [vmem:[#allocation5 + $0x88] sm:$0xff]
        %v274 = vld [vmem:[#allocation5 + $0x90] sm:$0xff]
        %v275 = vld [vmem:[#allocation5 + $0x98] sm:$0xff]
        %v276 = vld [vmem:[#allocation5 + $0xa0] sm:$0xff]
        %v277 = vld [vmem:[#allocation5 + $0xa8] sm:$0xff]
        %v278 = vld [vmem:[#allocation5 + $0xb0] sm:$0xff]
        %v279 = vld [vmem:[#allocation5 + $0xb8] sm:$0xff]
        %v280 = vld [vmem:[#allocation5 + $0xc0] sm:$0xff]
        %v281 = vld [vmem:[#allocation5 + $0xc8] sm:$0xff]
        %v282 = vld [vmem:[#allocation5 + $0xd0] sm:$0xff]
        %v283 = vld [vmem:[#allocation5 + $0xd8] sm:$0xff]
        %v284 = vld [vmem:[#allocation5 + $0xe0] sm:$0xff]
        %v285 = vld [vmem:[#allocation5 + $0xe8] sm:$0xff]
        %v286 = vld [vmem:[#allocation5 + $0xf0] sm:$0xff]
        %v287 = vld [vmem:[#allocation5 + $0xf8] sm:$0xff]
        %v288 = vld [vmem:[%s2] sm:$0x3]
        %v290 = vlaneseq
        %v291 = vshrl.u32 %v290, 7
        %v292 = vsub.s32 0, %v291
        %v293 = vrot.slane %v288, %v292
        %v294 = vlaneseq
        %v295 = vshrl.u32 %v294, 7
        %v296 = vsub.s32 1, %v295
        %v297 = vrot.slane %v288, %v296
        %300 = vxpose.xlu0.b32.start [1/16] %v224, 128
        %301 = vxpose.xlu0.b32.cont [2/16] %v226, 128
        %302 = vxpose.xlu0.b32.cont [3/16] %v228, 128
        %303 = vxpose.xlu0.b32.cont [4/16] %v230, 128
        %304 = vxpose.xlu0.b32.cont [5/16] %v232, 128
        %305 = vxpose.xlu0.b32.cont [6/16] %v234, 128
        %306 = vxpose.xlu0.b32.cont [7/16] %v236, 128
        %307 = vxpose.xlu0.b32.cont [8/16] %v238, 128
        %308 = vxpose.xlu0.b32.cont [9/16] %v240, 128
        %309 = vxpose.xlu0.b32.cont [10/16] %v242, 128
        %310 = vxpose.xlu0.b32.cont [11/16] %v244, 128
        %311 = vxpose.xlu0.b32.cont [12/16] %v246, 128
        %312 = vxpose.xlu0.b32.cont [13/16] %v248, 128
        %313 = vxpose.xlu0.b32.cont [14/16] %v250, 128
        %314 = vxpose.xlu0.b32.cont [15/16] %v252, 128
        %315 = vxpose.xlu0.b32.end [16/16] %v254, 128
        %v316 = vpop.trf.xlu0
        %v317 = vpop.trf.xlu0
        %v318 = vpop.trf.xlu0
        %v319 = vpop.trf.xlu0
        %v320 = vpop.trf.xlu0
        %v321 = vpop.trf.xlu0
        %v322 = vpop.trf.xlu0
        %v323 = vpop.trf.xlu0
        %v324 = vpop.trf.xlu0
        %v325 = vpop.trf.xlu0
        %v326 = vpop.trf.xlu0
        %v327 = vpop.trf.xlu0
        %v328 = vpop.trf.xlu0
        %v329 = vpop.trf.xlu0
        %v330 = vpop.trf.xlu0
        %v331 = vpop.trf.xlu0
        %332 = vxpose.xlu0.b32.start [1/16] %v225, 128
        %333 = vxpose.xlu0.b32.cont [2/16] %v227, 128
        %334 = vxpose.xlu0.b32.cont [3/16] %v229, 128
        %335 = vxpose.xlu0.b32.cont [4/16] %v231, 128
        %336 = vxpose.xlu0.b32.cont [5/16] %v233, 128
        %337 = vxpose.xlu0.b32.cont [6/16] %v235, 128
        %338 = vxpose.xlu0.b32.cont [7/16] %v237, 128
        %339 = vxpose.xlu0.b32.cont [8/16] %v239, 128
        %340 = vxpose.xlu0.b32.cont [9/16] %v241, 128
        %341 = vxpose.xlu0.b32.cont [10/16] %v243, 128
        %342 = vxpose.xlu0.b32.cont [11/16] %v245, 128
        %343 = vxpose.xlu0.b32.cont [12/16] %v247, 128
        %344 = vxpose.xlu0.b32.cont [13/16] %v249, 128
        %345 = vxpose.xlu0.b32.cont [14/16] %v251, 128
        %346 = vxpose.xlu0.b32.cont [15/16] %v253, 128
        %347 = vxpose.xlu0.b32.end [16/16] %v255, 128
        %v348 = vpop.trf.xlu0
        %v349 = vpop.trf.xlu0
        %v350 = vpop.trf.xlu0
        %v351 = vpop.trf.xlu0
        %v352 = vpop.trf.xlu0
        %v353 = vpop.trf.xlu0
        %v354 = vpop.trf.xlu0
        %v355 = vpop.trf.xlu0
        %v356 = vpop.trf.xlu0
        %v357 = vpop.trf.xlu0
        %v358 = vpop.trf.xlu0
        %v359 = vpop.trf.xlu0
        %v360 = vpop.trf.xlu0
        %v361 = vpop.trf.xlu0
        %v362 = vpop.trf.xlu0
        %v363 = vpop.trf.xlu0
        %364 = vmatprep.subr.mxu0 %v257
        %365 = vmatpush1.msra.mxu0 %v256
        %366 = vmatprep.subr.mxu0 %v259
        %367 = vmatpush1.msra.mxu0 %v258
        %368 = vmatprep.subr.mxu0 %v261
        %369 = vmatpush1.msra.mxu0 %v260
        %370 = vmatprep.subr.mxu0 %v263
        %371 = vmatpush1.msra.mxu0 %v262
        %372 = vmatprep.subr.mxu0 %v265
        %373 = vmatpush1.msra.mxu0 %v264
        %374 = vmatprep.subr.mxu0 %v267
        %375 = vmatpush1.msra.mxu0 %v266
        %376 = vmatprep.subr.mxu0 %v269
        %377 = vmatpush1.msra.mxu0 %v268
        %378 = vmatprep.subr.mxu0 %v271
        %379 = vmatpush1.msra.mxu0 %v270
        %380 = vmatprep.subr.mxu0 %v273
        %381 = vmatpush1.msra.mxu0 %v272
        %382 = vmatprep.subr.mxu0 %v275
        %383 = vmatpush1.msra.mxu0 %v274
        %384 = vmatprep.subr.mxu0 %v277
        %385 = vmatpush1.msra.mxu0 %v276
        %386 = vmatprep.subr.mxu0 %v279
        %387 = vmatpush1.msra.mxu0 %v278
        %388 = vmatprep.subr.mxu0 %v281
        %389 = vmatpush1.msra.mxu0 %v280
        %390 = vmatprep.subr.mxu0 %v283
        %391 = vmatpush1.msra.mxu0 %v282
        %392 = vmatprep.subr.mxu0 %v285
        %393 = vmatpush1.msra.mxu0 %v284
        %394 = vmatprep.subr.mxu0 %v287
        %395 = vmatpush1.msra.mxu0 %v286
        %396 = vmatprep.subr.mxu0 0.0
        %397 = vmatpush1.msra.mxu0 0.0
        %398 = vmatprep.subr.mxu0 0.0
        %399 = vmatpush1.msra.mxu0 0.0
        %400 = vmatprep.subr.mxu0 0.0
        %401 = vmatpush1.msra.mxu0 0.0
        %402 = vmatprep.subr.mxu0 0.0
        %403 = vmatpush1.msra.mxu0 0.0
        %404 = vmatprep.subr.mxu0 0.0
        %405 = vmatpush1.msra.mxu0 0.0
        %406 = vmatprep.subr.mxu0 0.0
        %407 = vmatpush1.msra.mxu0 0.0
        %408 = vmatprep.subr.mxu0 0.0
        %409 = vmatpush1.msra.mxu0 0.0
        %410 = vmatprep.subr.mxu0 0.0
        %411 = vmatpush1.msra.mxu0 0.0
        %412 = vmatprep.subr.mxu0 0.0
        %413 = vmatpush1.msra.mxu0 0.0
        %414 = vmatprep.subr.mxu0 0.0
        %415 = vmatpush1.msra.mxu0 0.0
        %416 = vmatprep.subr.mxu0 0.0
        %417 = vmatpush1.msra.mxu0 0.0
        %418 = vmatprep.subr.mxu0 0.0
        %419 = vmatpush1.msra.mxu0 0.0
        %420 = vmatprep.subr.mxu0 0.0
        %421 = vmatpush1.msra.mxu0 0.0
        %422 = vmatprep.subr.mxu0 0.0
        %423 = vmatpush1.msra.mxu0 0.0
        %424 = vmatprep.subr.mxu0 0.0
        %425 = vmatpush1.msra.mxu0 0.0
        %426 = vmatprep.subr.mxu0 0.0
        %427 = vmatpush1.msra.mxu0 0.0
        %428 = vmatprep.mubr.f32.mxu0 0.0
        %429 = vmatmul.mubr.f32.gmra.mrb[0].mxu0 %v316
        %v430 = vpop.f32.mrb[0].mxu0
        %v431 = vadd.f32 %v293, %v430
        %v432 = vpop.f32.mrb[0].mxu0
        %v433 = vadd.f32 %v297, %v432
        %434 = vmatprep.mubr.f32.mxu0 0.0
        %435 = vmatmul.mubr.f32.gmra.mrb[0].mxu0 %v317
        %v436 = vpop.f32.mrb[0].mxu0
        %v437 = vadd.f32 %v293, %v436
        %v438 = vpop.f32.mrb[0].mxu0
        %v439 = vadd.f32 %v297, %v438
        %440 = vmatprep.mubr.f32.mxu0 0.0
        %441 = vmatmul.mubr.f32.gmra.mrb[0].mxu0 %v318
        %v442 = vpop.f32.mrb[0].mxu0
        %v443 = vadd.f32 %v293, %v442
        %v444 = vpop.f32.mrb[0].mxu0
        %v445 = vadd.f32 %v297, %v444
        %446 = vmatprep.mubr.f32.mxu0 0.0
        %447 = vmatmul.mubr.f32.gmra.mrb[0].mxu0 %v319
        %v448 = vpop.f32.mrb[0].mxu0
        %v449 = vadd.f32 %v293, %v448
        %v450 = vpop.f32.mrb[0].mxu0
        %v451 = vadd.f32 %v297, %v450
        %452 = vmatprep.mubr.f32.mxu0 0.0
        %453 = vmatmul.mubr.f32.gmra.mrb[0].mxu0 %v320
        %v454 = vpop.f32.mrb[0].mxu0
        %v455 = vadd.f32 %v293, %v454
        %v456 = vpop.f32.mrb[0].mxu0
        %v457 = vadd.f32 %v297, %v456
        %458 = vmatprep.mubr.f32.mxu0 0.0
        %459 = vmatmul.mubr.f32.gmra.mrb[0].mxu0 %v321
        %v460 = vpop.f32.mrb[0].mxu0
        %v461 = vadd.f32 %v293, %v460
        %v462 = vpop.f32.mrb[0].mxu0
        %v463 = vadd.f32 %v297, %v462
        %464 = vmatprep.mubr.f32.mxu0 0.0
        %465 = vmatmul.mubr.f32.gmra.mrb[0].mxu0 %v322
        %v466 = vpop.f32.mrb[0].mxu0
        %v467 = vadd.f32 %v293, %v466
        %v468 = vpop.f32.mrb[0].mxu0
        %v469 = vadd.f32 %v297, %v468
        %470 = vmatprep.mubr.f32.mxu0 0.0
        %471 = vmatmul.mubr.f32.gmra.mrb[0].mxu0 %v323
        %v472 = vpop.f32.mrb[0].mxu0
        %v473 = vadd.f32 %v293, %v472
        %v474 = vpop.f32.mrb[0].mxu0
        %v475 = vadd.f32 %v297, %v474
        %476 = vmatprep.mubr.f32.mxu0 0.0
        %477 = vmatmul.mubr.f32.gmra.mrb[0].mxu0 %v324
        %v478 = vpop.f32.mrb[0].mxu0
        %v479 = vadd.f32 %v293, %v478
        %v480 = vpop.f32.mrb[0].mxu0
        %v481 = vadd.f32 %v297, %v480
        %482 = vmatprep.mubr.f32.mxu0 0.0
        %483 = vmatmul.mubr.f32.gmra.mrb[0].mxu0 %v325
        %v484 = vpop.f32.mrb[0].mxu0
        %v485 = vadd.f32 %v293, %v484
        %v486 = vpop.f32.mrb[0].mxu0
        %v487 = vadd.f32 %v297, %v486
        %488 = vmatprep.mubr.f32.mxu0 0.0
        %489 = vmatmul.mubr.f32.gmra.mrb[0].mxu0 %v326
        %v490 = vpop.f32.mrb[0].mxu0
        %v491 = vadd.f32 %v293, %v490
        %v492 = vpop.f32.mrb[0].mxu0
        %v493 = vadd.f32 %v297, %v492
        %494 = vmatprep.mubr.f32.mxu0 0.0
        %495 = vmatmul.mubr.f32.gmra.mrb[0].mxu0 %v327
        %v496 = vpop.f32.mrb[0].mxu0
        %v497 = vadd.f32 %v293, %v496
        %v498 = vpop.f32.mrb[0].mxu0
        %v499 = vadd.f32 %v297, %v498
        %500 = vmatprep.mubr.f32.mxu0 0.0
        %501 = vmatmul.mubr.f32.gmra.mrb[0].mxu0 %v328
        %v502 = vpop.f32.mrb[0].mxu0
        %v503 = vadd.f32 %v293, %v502
        %v504 = vpop.f32.mrb[0].mxu0
        %v505 = vadd.f32 %v297, %v504
        %506 = vmatprep.mubr.f32.mxu0 0.0
        %507 = vmatmul.mubr.f32.gmra.mrb[0].mxu0 %v329
        %v508 = vpop.f32.mrb[0].mxu0
        %v509 = vadd.f32 %v293, %v508
        %v510 = vpop.f32.mrb[0].mxu0
        %v511 = vadd.f32 %v297, %v510
        %512 = vmatprep.mubr.f32.mxu0 0.0
        %513 = vmatmul.mubr.f32.gmra.mrb[0].mxu0 %v330
        %v514 = vpop.f32.mrb[0].mxu0
        %v515 = vadd.f32 %v293, %v514
        %v516 = vpop.f32.mrb[0].mxu0
        %v517 = vadd.f32 %v297, %v516
        %518 = vmatprep.mubr.f32.mxu0 0.0
        %519 = vmatmul.mubr.f32.gmra.mrb[0].mxu0 %v331
        %v520 = vpop.f32.mrb[0].mxu0
        %v521 = vadd.f32 %v293, %v520
        %v522 = vpop.f32.mrb[0].mxu0
        %v523 = vadd.f32 %v297, %v522
        %524 = vmatprep.mubr.f32.mxu0 0.0
        %525 = vmatmul.mubr.f32.gmra.mrb[0].mxu0 %v348
        %v526 = vpop.f32.mrb[0].mxu0
        %v527 = vadd.f32 %v293, %v526
        %v528 = vpop.f32.mrb[0].mxu0
        %v529 = vadd.f32 %v297, %v528
        %530 = vmatprep.mubr.f32.mxu0 0.0
        %531 = vmatmul.mubr.f32.gmra.mrb[0].mxu0 %v349
        %v532 = vpop.f32.mrb[0].mxu0
        %v533 = vadd.f32 %v293, %v532
        %v534 = vpop.f32.mrb[0].mxu0
        %v535 = vadd.f32 %v297, %v534
        %536 = vmatprep.mubr.f32.mxu0 0.0
        %537 = vmatmul.mubr.f32.gmra.mrb[0].mxu0 %v350
        %v538 = vpop.f32.mrb[0].mxu0
        %v539 = vadd.f32 %v293, %v538
        %v540 = vpop.f32.mrb[0].mxu0
        %v541 = vadd.f32 %v297, %v540
        %542 = vmatprep.mubr.f32.mxu0 0.0
        %543 = vmatmul.mubr.f32.gmra.mrb[0].mxu0 %v351
        %v544 = vpop.f32.mrb[0].mxu0
        %v545 = vadd.f32 %v293, %v544
        %v546 = vpop.f32.mrb[0].mxu0
        %v547 = vadd.f32 %v297, %v546
        %548 = vmatprep.mubr.f32.mxu0 0.0
        %549 = vmatmul.mubr.f32.gmra.mrb[0].mxu0 %v352
        %v550 = vpop.f32.mrb[0].mxu0
        %v551 = vadd.f32 %v293, %v550
        %v552 = vpop.f32.mrb[0].mxu0
        %v553 = vadd.f32 %v297, %v552
        %554 = vmatprep.mubr.f32.mxu0 0.0
        %555 = vmatmul.mubr.f32.gmra.mrb[0].mxu0 %v353
        %v556 = vpop.f32.mrb[0].mxu0
        %v557 = vadd.f32 %v293, %v556
        %v558 = vpop.f32.mrb[0].mxu0
        %v559 = vadd.f32 %v297, %v558
        %560 = vmatprep.mubr.f32.mxu0 0.0
        %561 = vmatmul.mubr.f32.gmra.mrb[0].mxu0 %v354
        %v562 = vpop.f32.mrb[0].mxu0
        %v563 = vadd.f32 %v293, %v562
        %v564 = vpop.f32.mrb[0].mxu0
        %v565 = vadd.f32 %v297, %v564
        %566 = vmatprep.mubr.f32.mxu0 0.0
        %567 = vmatmul.mubr.f32.gmra.mrb[0].mxu0 %v355
        %v568 = vpop.f32.mrb[0].mxu0
        %v569 = vadd.f32 %v293, %v568
        %v570 = vpop.f32.mrb[0].mxu0
        %v571 = vadd.f32 %v297, %v570
        %572 = vmatprep.mubr.f32.mxu0 0.0
        %573 = vmatmul.mubr.f32.gmra.mrb[0].mxu0 %v356
        %v574 = vpop.f32.mrb[0].mxu0
        %v575 = vadd.f32 %v293, %v574
        %v576 = vpop.f32.mrb[0].mxu0
        %v577 = vadd.f32 %v297, %v576
        %578 = vmatprep.mubr.f32.mxu0 0.0
        %579 = vmatmul.mubr.f32.gmra.mrb[0].mxu0 %v357
        %v580 = vpop.f32.mrb[0].mxu0
        %v581 = vadd.f32 %v293, %v580
        %v582 = vpop.f32.mrb[0].mxu0
        %v583 = vadd.f32 %v297, %v582
        %584 = vmatprep.mubr.f32.mxu0 0.0
        %585 = vmatmul.mubr.f32.gmra.mrb[0].mxu0 %v358
        %v586 = vpop.f32.mrb[0].mxu0
        %v587 = vadd.f32 %v293, %v586
        %v588 = vpop.f32.mrb[0].mxu0
        %v589 = vadd.f32 %v297, %v588
        %590 = vmatprep.mubr.f32.mxu0 0.0
        %591 = vmatmul.mubr.f32.gmra.mrb[0].mxu0 %v359
        %v592 = vpop.f32.mrb[0].mxu0
        %v593 = vadd.f32 %v293, %v592
        %v594 = vpop.f32.mrb[0].mxu0
        %v595 = vadd.f32 %v297, %v594
        %596 = vmatprep.mubr.f32.mxu0 0.0
        %597 = vmatmul.mubr.f32.gmra.mrb[0].mxu0 %v360
        %v598 = vpop.f32.mrb[0].mxu0
        %v599 = vadd.f32 %v293, %v598
        %v600 = vpop.f32.mrb[0].mxu0
        %v601 = vadd.f32 %v297, %v600
        %602 = vmatprep.mubr.f32.mxu0 0.0
        %603 = vmatmul.mubr.f32.gmra.mrb[0].mxu0 %v361
        %v604 = vpop.f32.mrb[0].mxu0
        %v605 = vadd.f32 %v293, %v604
        %v606 = vpop.f32.mrb[0].mxu0
        %v607 = vadd.f32 %v297, %v606
        %608 = vmatprep.mubr.f32.mxu0 0.0
        %609 = vmatmul.mubr.f32.gmra.mrb[0].mxu0 %v362
        %v610 = vpop.f32.mrb[0].mxu0
        %v611 = vadd.f32 %v293, %v610
        %v612 = vpop.f32.mrb[0].mxu0
        %v613 = vadd.f32 %v297, %v612
        %614 = vmatprep.mubr.f32.mxu0 0.0
        %615 = vmatmul.mubr.f32.gmra.mrb[0].mxu0 %v363
        %v616 = vpop.f32.mrb[0].mxu0
        %v617 = vadd.f32 %v293, %v616
        %v618 = vpop.f32.mrb[0].mxu0
        %v619 = vadd.f32 %v297, %v618
        %620 = vdwg.mxu0
        %621 = vst [vmem:[%s221] sm:$0xff] %v431
        %622 = vst [vmem:[%s221 + $0x8] sm:$0xff] %v433
        %623 = vst [vmem:[%s221 + $0x10] sm:$0xff] %v437
        %624 = vst [vmem:[%s221 + $0x18] sm:$0xff] %v439
        %625 = vst [vmem:[%s221 + $0x20] sm:$0xff] %v443
        %626 = vst [vmem:[%s221 + $0x28] sm:$0xff] %v445
        %627 = vst [vmem:[%s221 + $0x30] sm:$0xff] %v449
        %628 = vst [vmem:[%s221 + $0x38] sm:$0xff] %v451
        %629 = vst [vmem:[%s221 + $0x40] sm:$0xff] %v455
        %630 = vst [vmem:[%s221 + $0x48] sm:$0xff] %v457
        %631 = vst [vmem:[%s221 + $0x50] sm:$0xff] %v461
        %632 = vst [vmem:[%s221 + $0x58] sm:$0xff] %v463
        %633 = vst [vmem:[%s221 + $0x60] sm:$0xff] %v467
        %634 = vst [vmem:[%s221 + $0x68] sm:$0xff] %v469
        %635 = vst [vmem:[%s221 + $0x70] sm:$0xff] %v473
        %636 = vst [vmem:[%s221 + $0x78] sm:$0xff] %v475
        %637 = vst [vmem:[%s221 + $0x80] sm:$0xff] %v479
        %638 = vst [vmem:[%s221 + $0x88] sm:$0xff] %v481
        %639 = vst [vmem:[%s221 + $0x90] sm:$0xff] %v485
        %640 = vst [vmem:[%s221 + $0x98] sm:$0xff] %v487
        %641 = vst [vmem:[%s221 + $0xa0] sm:$0xff] %v491
        %642 = vst [vmem:[%s221 + $0xa8] sm:$0xff] %v493
        %643 = vst [vmem:[%s221 + $0xb0] sm:$0xff] %v497
        %644 = vst [vmem:[%s221 + $0xb8] sm:$0xff] %v499
        %645 = vst [vmem:[%s221 + $0xc0] sm:$0xff] %v503
        %646 = vst [vmem:[%s221 + $0xc8] sm:$0xff] %v505
        %647 = vst [vmem:[%s221 + $0xd0] sm:$0xff] %v509
        %648 = vst [vmem:[%s221 + $0xd8] sm:$0xff] %v511
        %649 = vst [vmem:[%s221 + $0xe0] sm:$0xff] %v515
        %650 = vst [vmem:[%s221 + $0xe8] sm:$0xff] %v517
        %651 = vst [vmem:[%s221 + $0xf0] sm:$0xff] %v521
        %652 = vst [vmem:[%s221 + $0xf8] sm:$0xff] %v523
        %653 = vst [vmem:[%s221 + $0x100] sm:$0xff] %v527
        %654 = vst [vmem:[%s221 + $0x108] sm:$0xff] %v529
        %655 = vst [vmem:[%s221 + $0x110] sm:$0xff] %v533
        %656 = vst [vmem:[%s221 + $0x118] sm:$0xff] %v535
        %657 = vst [vmem:[%s221 + $0x120] sm:$0xff] %v539
        %658 = vst [vmem:[%s221 + $0x128] sm:$0xff] %v541
        %659 = vst [vmem:[%s221 + $0x130] sm:$0xff] %v545
        %660 = vst [vmem:[%s221 + $0x138] sm:$0xff] %v547
        %661 = vst [vmem:[%s221 + $0x140] sm:$0xff] %v551
        %662 = vst [vmem:[%s221 + $0x148] sm:$0xff] %v553
        %663 = vst [vmem:[%s221 + $0x150] sm:$0xff] %v557
        %664 = vst [vmem:[%s221 + $0x158] sm:$0xff] %v559
        %665 = vst [vmem:[%s221 + $0x160] sm:$0xff] %v563
        %666 = vst [vmem:[%s221 + $0x168] sm:$0xff] %v565
        %667 = vst [vmem:[%s221 + $0x170] sm:$0xff] %v569
        %668 = vst [vmem:[%s221 + $0x178] sm:$0xff] %v571
        %669 = vst [vmem:[%s221 + $0x180] sm:$0xff] %v575
        %670 = vst [vmem:[%s221 + $0x188] sm:$0xff] %v577
        %671 = vst [vmem:[%s221 + $0x190] sm:$0xff] %v581
        %672 = vst [vmem:[%s221 + $0x198] sm:$0xff] %v583
        %673 = vst [vmem:[%s221 + $0x1a0] sm:$0xff] %v587
        %674 = vst [vmem:[%s221 + $0x1a8] sm:$0xff] %v589
        %675 = vst [vmem:[%s221 + $0x1b0] sm:$0xff] %v593
        %676 = vst [vmem:[%s221 + $0x1b8] sm:$0xff] %v595
        %677 = vst [vmem:[%s221 + $0x1c0] sm:$0xff] %v599
        %678 = vst [vmem:[%s221 + $0x1c8] sm:$0xff] %v601
        %679 = vst [vmem:[%s221 + $0x1d0] sm:$0xff] %v605
        %680 = vst [vmem:[%s221 + $0x1d8] sm:$0xff] %v607
        %681 = vst [vmem:[%s221 + $0x1e0] sm:$0xff] %v611
        %682 = vst [vmem:[%s221 + $0x1e8] sm:$0xff] %v613
        %683 = vst [vmem:[%s221 + $0x1f0] sm:$0xff] %v617
        %684 = vst [vmem:[%s221 + $0x1f8] sm:$0xff] %v619
        %s685 = sand.u32 %s113, 1
        %s686 = scalar_lea.sflag [#allocation4], %s685
        %s687 = sand.u32 %s113, 1
        %s688 = smul.addr %s687, 512
        %s689 = scalar_lea.vmem [#allocation7], %s688
        // Predicated region
        $region41: #{tpu_custom_call.1} parent=31 // pred_check
          %p690 = pneg %p123
        $region42: #{tpu_custom_call.1} parent=31 // pred_check_branch
          %692 = sbr.rel (%p690) target = $region44
        $region43: #{tpu_custom_call.1} parent=31 // pred_region
          %s693 = smul.u32 32, %s26
          %s695 = ssub.s32 8192, 8192
          %696 = vsyncadd %s686, %s695
          %s697 = smul.addr %s693, 2
          %s698 = smul.addr %s25, 64
          %s699 = sadd.s32 %s697, %s698
          %s700 = smul.addr %s699, 128
          %s701 = scalar_lea.hbm %s3, %s700
          %s702 = sshll.u32 %s689, 4
          %s703 = int_to_ptr.vmem [resolvable:$true] %s702
          %708 = dma.vmem_to_hbm [thread:$0]  %s703, 8192, %s701, %s686, 256, 256, 16
        $region44: #{tpu_custom_call.1} parent=31 // pred_fallthru
          _
      $region32: #{tpu_custom_call.1} parent=5 // pred_fallthru
        _
      %p709 = scmp.le.s32.totalorder 2, %s16
      // Predicated region
      $region45: #{tpu_custom_call.1} parent=5 // pred_check
        %p710 = pneg %p709
      $region46: #{tpu_custom_call.1} parent=5 // pred_check_branch
        %712 = sbr.rel (%p710) target = $region48
      $region47: #{tpu_custom_call.1} parent=5 // pred_region
        %s713 = ssub.s32 %s16, 2
        // Predicated region
        $region49: #{tpu_custom_call.1} parent=47 // pred_check
          %p714 = pneg %p129
        $region50: #{tpu_custom_call.1} parent=47 // pred_check_branch
          %716 = sbr.rel (%p714) target = $region52
        $region51: #{tpu_custom_call.1} parent=47 // pred_region
          %s717 = sand.u32 %s114, 1
          %s718 = scalar_lea.sflag [#allocation4], %s717
          %s719 = sand.u32 %s114, 1
          %s720 = smul.addr %s719, 512
          %s721 = scalar_lea.vmem [#allocation7], %s720
          %722 = dma.done %s718, 8192
        $region52: #{tpu_custom_call.1} parent=47 // pred_fallthru
          _
      $region48: #{tpu_custom_call.1} parent=5 // pred_fallthru
        _
    $region6: #{tpu_custom_call.1} parent=1 // loop_footer
      %s20 = sadd.s32 1, %s16
    $region7: #{tpu_custom_call.1} parent=1 // loop_footer_branch
      %15 = sbr.rel target = $region3
    $region8: #{tpu_custom_call.1} parent=1 // loop_exit
      _
    %723 = vsyncpa [#allocation3], 1
    %s724 = scalar_lea.sflag [#allocation3], 1
    %725 = vsyncpa %s724, 1
    %726 = vsyncpa [#allocation6], 1
    %727 = vsyncpa [#allocation4], 1
    %s728 = scalar_lea.sflag [#allocation4], 1
    %729 = vsyncpa %s728, 1

</llo_original>
